<compile_context>
chip_gen: v6e
topology: v6e:2x2x1
jax: 0.10.0
libtpu: 0.0.40
codegen_flags: <defaults>
</compile_context>

<pallas_src>
import functools

import jax
import jax.numpy as jnp
from jax.experimental import pallas as pl
from jax.experimental.pallas import tpu as pltpu

HIDDEN = 128
LANE = 128
SUBLANE = 8


def _round_up(x, m):
    return (x + m - 1) // m * m


def _cdiv(a, b):
    return (a + b - 1) // b


def dqn_kernel(x_ref, w1_ref, b1_ref, w2_ref, b2_ref, w3_ref, b3_ref, o_ref, *, y_dim):
    # Layer 1: Linear(x_dim, 128) + ReLU   (bf16 MXU feed, f32 accumulate, K = x_dim)
    x = x_ref[...].astype(jnp.bfloat16)
    h1 = jnp.dot(x, w1_ref[...], preferred_element_type=jnp.float32)
    h1 = jnp.maximum(h1 + b1_ref[...], 0.0)
    # Layer 2: Linear(128, 128) + ReLU
    h2 = jnp.dot(h1.astype(jnp.bfloat16), w2_ref[...],
                 preferred_element_type=jnp.float32)
    h2 = jnp.maximum(h2 + b2_ref[...], 0.0)
    # Layer 3: Linear(128, y_pad) + ReLU.  w3/b3 are zero-padded to y_pad=128 for a
    # clean MXU shape; only the first y_dim columns are stored (lane-masked vst —
    # fewer HBM bytes wins in this memory-bound regime).
    h3 = jnp.dot(h2.astype(jnp.bfloat16), w3_ref[...],
                 preferred_element_type=jnp.float32)
    h3 = jnp.maximum(h3 + b3_ref[...], 0.0)
    o_ref[...] = h3[:, :y_dim].astype(o_ref.dtype)


@functools.partial(jax.jit, static_argnames=("tb_max",))
def dqn_forward(obs, params, *, tb_max=2048):
    """obs: (B, x_dim) f32.  params: dict w1,b1,w2,b2,w3,b3 with weights stored (in, out)."""
    w1, b1, w2, b2, w3, b3 = (params[k] for k in ("w1", "b1", "w2", "b2", "w3", "b3"))
    B, x_dim = obs.shape
    y_dim = w3.shape[1]

    # Only the w3/b3 matmul dimension gets lane padding; obs and the output do not.
    y_pad = _round_up(max(y_dim, LANE), LANE)

    # Batch tiling: pick the number of grid steps first.  For large B we want an
    # even step count (>= 2) so v7x megacore splits the "parallel" axis evenly;
    # for small B a single tile avoids pointless per-step overhead on 1-TC chips.
    n_steps = _cdiv(B, tb_max)
    if n_steps > 1:
        n_steps = _round_up(n_steps, 2)
    TB = _round_up(_cdiv(B, n_steps), SUBLANE)
    B_pad = n_steps * TB
    grid = (n_steps,)

    f32, bf16 = jnp.float32, jnp.bfloat16

    # Row padding only (at most TB-1 rows, usually < 8); no feature-axis padding.
    obs_p = obs if B_pad == B else jnp.pad(obs, ((0, B_pad - B), (0, 0)))
    w1_b = w1.astype(bf16)                                            # (x_dim, 128)
    w2_b = w2.astype(bf16)                                            # (128, 128)
    w3_p = jnp.zeros((HIDDEN, y_pad), bf16).at[:, :y_dim].set(w3.astype(bf16))
    b1_p = b1.astype(f32)
    b2_p = b2.astype(f32)
    b3_p = jnp.zeros((1, y_pad), f32).at[:, :y_dim].set(b3.astype(f32))

    flops = 2 * B_pad * (x_dim * HIDDEN + HIDDEN * HIDDEN + HIDDEN * y_pad)
    bytes_accessed = (obs_p.size * 4 + B_pad * y_dim * 4
                      + (w1_b.size + w2_b.size + w3_p.size) * 2
                      + (b1_p.size + b2_p.size + b3_p.size) * 4)

    out = pl.pallas_call(
        functools.partial(dqn_kernel, y_dim=y_dim),
        out_shape=jax.ShapeDtypeStruct((B_pad, y_dim), f32),
        grid=grid,
        in_specs=[
            pl.BlockSpec((TB, x_dim), lambda i: (i, 0)),         # obs: streamed, unpadded K
            pl.BlockSpec((x_dim, HIDDEN), lambda i: (0, 0)),      # w1: VMEM-resident
            pl.BlockSpec((1, HIDDEN), lambda i: (0, 0)),          # b1
            pl.BlockSpec((HIDDEN, HIDDEN), lambda i: (0, 0)),     # w2
            pl.BlockSpec((1, HIDDEN), lambda i: (0, 0)),          # b2
            pl.BlockSpec((HIDDEN, y_pad), lambda i: (0, 0)),      # w3 (zero-padded cols)
            pl.BlockSpec((1, y_pad), lambda i: (0, 0)),           # b3 (zero-padded)
        ],
        out_specs=pl.BlockSpec((TB, y_dim), lambda i: (i, 0)),    # unpadded output tile
        compiler_params=pltpu.CompilerParams(
            dimension_semantics=("parallel",),                    # megacore on v7x
            vmem_limit_bytes=32 * 1024 * 1024,                    # headroom vs v5e default
        ),
        cost_estimate=pl.CostEstimate(
            flops=flops, transcendentals=0, bytes_accessed=bytes_accessed),
    )(obs_p, w1_b, b1_p, w2_b, b2_p, w3_p, b3_p)

    return out[:B] if B_pad != B else out


def init_dqn_params(key, x_dim, y_dim, hidden=HIDDEN):
    """PyTorch nn.Linear default init: U(-1/sqrt(fan_in), 1/sqrt(fan_in)).
    Weights stored transposed relative to PyTorch, i.e. (in_dim, out_dim)."""
    ks = jax.random.split(key, 6)

    def linear(kw, kb, fan_in, fan_out):
        bound = 1.0 / jnp.sqrt(fan_in)
        w = jax.random.uniform(kw, (fan_in, fan_out), jnp.float32, -bound, bound)
        b = jax.random.uniform(kb, (1, fan_out), jnp.float32, -bound, bound)
        return w, b

    w1, b1 = linear(ks[0], ks[1], x_dim, hidden)
    w2, b2 = linear(ks[2], ks[3], hidden, hidden)
    w3, b3 = linear(ks[4], ks[5], hidden, y_dim)
    return {"w1": w1, "b1": b1, "w2": w2, "b2": b2, "w3": w3, "b3": b3}


def dqn_reference(obs, params):
    """Pure-JAX reference with the same bf16-feed / f32-accumulate numerics."""
    bf16 = jnp.bfloat16
    h = jnp.dot(obs.astype(bf16), params["w1"].astype(bf16),
                preferred_element_type=jnp.float32)
    h = jnp.maximum(h + params["b1"], 0.0)
    h = jnp.dot(h.astype(bf16), params["w2"].astype(bf16),
                preferred_element_type=jnp.float32)
    h = jnp.maximum(h + params["b2"], 0.0)
    h = jnp.dot(h.astype(bf16), params["w3"].astype(bf16),
                preferred_element_type=jnp.float32)
    return jnp.maximum(h + params["b3"], 0.0)


if __name__ == "__main__":
    key = jax.random.PRNGKey(0)
    k_param, k_obs, k_obs2 = jax.random.split(key, 3)

    # Small deterministic test (single grid step).
    batch, x_dim, y_dim = 2, 32, 8
    params = init_dqn_params(k_param, x_dim, y_dim)
    obs = jax.random.normal(k_obs, (batch, x_dim), jnp.float32)

    out = dqn_forward(obs, params)
    out = jax.block_until_ready(out)
    ref = dqn_reference(obs, params)
    assert out.shape == (batch, y_dim), out.shape
    assert jnp.allclose(out, ref, atol=1e-2, rtol=1e-2), "mismatch vs reference"

    # Multi-step grid test (even step count, partial row padding exercised).
    batch2 = 300
    obs2 = jax.random.normal(k_obs2, (batch2, x_dim), jnp.float32)
    out2 = jax.block_until_ready(dqn_forward(obs2, params, tb_max=128))
    ref2 = dqn_reference(obs2, params)
    assert out2.shape == (batch2, y_dim), out2.shape
    assert jnp.allclose(out2, ref2, atol=1e-2, rtol=1e-2), "mismatch vs reference (batched)"

    print("KERNEL_OK")
</pallas_src>

<mosaic_0001>
module attributes {stable_mosaic.version = 11 : i64} {
  func.func @dqn_kernel(%arg0: i32, %arg1: memref<8x32xf32, #tpu.memory_space<vmem>>, %arg2: memref<32x128xbf16, #tpu.memory_space<vmem>>, %arg3: memref<1x128xf32, #tpu.memory_space<vmem>>, %arg4: memref<128x128xbf16, #tpu.memory_space<vmem>>, %arg5: memref<1x128xf32, #tpu.memory_space<vmem>>, %arg6: memref<128x128xbf16, #tpu.memory_space<vmem>>, %arg7: memref<1x128xf32, #tpu.memory_space<vmem>>, %arg8: memref<8x8xf32, #tpu.memory_space<vmem>>) attributes {dimension_semantics = [#tpu.dimension_semantics<parallel>], iteration_bounds = array<i64: 1>, scalar_prefetch = 0 : i64, scratch_operands = 0 : i64, tpu.core_type = #tpu.core_type<tc>, window_params = [{transform_indices = @transform_0, window_bounds = array<i64: 8, 32>}, {pipeline_mode = #tpu.pipeline_mode<synchronous>, transform_indices = @transform_1, window_bounds = array<i64: 32, 128>}, {pipeline_mode = #tpu.pipeline_mode<synchronous>, transform_indices = @transform_2, window_bounds = array<i64: 1, 128>}, {pipeline_mode = #tpu.pipeline_mode<synchronous>, transform_indices = @transform_3, window_bounds = array<i64: 128, 128>}, {pipeline_mode = #tpu.pipeline_mode<synchronous>, transform_indices = @transform_4, window_bounds = array<i64: 1, 128>}, {pipeline_mode = #tpu.pipeline_mode<synchronous>, transform_indices = @transform_5, window_bounds = array<i64: 128, 128>}, {pipeline_mode = #tpu.pipeline_mode<synchronous>, transform_indices = @transform_6, window_bounds = array<i64: 1, 128>}, {transform_indices = @transform_7, window_bounds = array<i64: 8, 8>}]} {
    %c0 = arith.constant 0 : index
    %c0_0 = arith.constant 0 : index
    %0 = vector.load %arg1[%c0, %c0_0] : memref<8x32xf32, #tpu.memory_space<vmem>>, vector<8x32xf32>
    %1 = arith.truncf %0 : vector<8x32xf32> to vector<8x32xbf16>
    %c0_1 = arith.constant 0 : index
    %c0_2 = arith.constant 0 : index
    %2 = vector.load %arg2[%c0_1, %c0_2] : memref<32x128xbf16, #tpu.memory_space<vmem>>, vector<32x128xbf16>
    %cst = arith.constant dense<0.000000e+00> : vector<8x128xf32>
    %3 = tpu.matmul %1, %2, %cst {dimension_numbers = #tpu.dot_dimension_numbers<[1], [0], [0], [1], [0, 0, 1, 1], [], []>} : vector<8x32xbf16>, vector<32x128xbf16>, vector<8x128xf32> -> vector<8x128xf32>
    %c0_3 = arith.constant 0 : index
    %c0_4 = arith.constant 0 : index
    %4 = vector.load %arg3[%c0_3, %c0_4] : memref<1x128xf32, #tpu.memory_space<vmem>>, vector<1x128xf32>
    %5 = vector.broadcast %4 : vector<1x128xf32> to vector<8x128xf32>
    %6 = arith.addf %3, %5 : vector<8x128xf32>
    %cst_5 = arith.constant 0.000000e+00 : f32
    %7 = vector.broadcast %cst_5 : f32 to vector<8x128xf32>
    %8 = arith.maximumf %6, %7 : vector<8x128xf32>
    %9 = arith.truncf %8 : vector<8x128xf32> to vector<8x128xbf16>
    %c0_6 = arith.constant 0 : index
    %c0_7 = arith.constant 0 : index
    %10 = vector.load %arg4[%c0_6, %c0_7] : memref<128x128xbf16, #tpu.memory_space<vmem>>, vector<128x128xbf16>
    %cst_8 = arith.constant dense<0.000000e+00> : vector<8x128xf32>
    %11 = tpu.matmul %9, %10, %cst_8 {dimension_numbers = #tpu.dot_dimension_numbers<[1], [0], [0], [1], [0, 0, 1, 1], [], []>} : vector<8x128xbf16>, vector<128x128xbf16>, vector<8x128xf32> -> vector<8x128xf32>
    %c0_9 = arith.constant 0 : index
    %c0_10 = arith.constant 0 : index
    %12 = vector.load %arg5[%c0_9, %c0_10] : memref<1x128xf32, #tpu.memory_space<vmem>>, vector<1x128xf32>
    %13 = vector.broadcast %12 : vector<1x128xf32> to vector<8x128xf32>
    %14 = arith.addf %11, %13 : vector<8x128xf32>
    %cst_11 = arith.constant 0.000000e+00 : f32
    %15 = vector.broadcast %cst_11 : f32 to vector<8x128xf32>
    %16 = arith.maximumf %14, %15 : vector<8x128xf32>
    %17 = arith.truncf %16 : vector<8x128xf32> to vector<8x128xbf16>
    %c0_12 = arith.constant 0 : index
    %c0_13 = arith.constant 0 : index
    %18 = vector.load %arg6[%c0_12, %c0_13] : memref<128x128xbf16, #tpu.memory_space<vmem>>, vector<128x128xbf16>
    %cst_14 = arith.constant dense<0.000000e+00> : vector<8x128xf32>
    %19 = tpu.matmul %17, %18, %cst_14 {dimension_numbers = #tpu.dot_dimension_numbers<[1], [0], [0], [1], [0, 0, 1, 1], [], []>} : vector<8x128xbf16>, vector<128x128xbf16>, vector<8x128xf32> -> vector<8x128xf32>
    %c0_15 = arith.constant 0 : index
    %c0_16 = arith.constant 0 : index
    %20 = vector.load %arg7[%c0_15, %c0_16] : memref<1x128xf32, #tpu.memory_space<vmem>>, vector<1x128xf32>
    %21 = vector.broadcast %20 : vector<1x128xf32> to vector<8x128xf32>
    %22 = arith.addf %19, %21 : vector<8x128xf32>
    %cst_17 = arith.constant 0.000000e+00 : f32
    %23 = vector.broadcast %cst_17 : f32 to vector<8x128xf32>
    %24 = arith.maximumf %22, %23 : vector<8x128xf32>
    %25 = vector.extract_strided_slice %24 {offsets = [0, 0], sizes = [8, 8], strides = [1, 1]} : vector<8x128xf32> to vector<8x8xf32>
    %c0_18 = arith.constant 0 : index
    %c0_19 = arith.constant 0 : index
    %26 = vector.load %arg8[%c0_18, %c0_19] : memref<8x8xf32, #tpu.memory_space<vmem>>, vector<8x8xf32>
    tpu.vector_store %arg8[%c0_18, %c0_19], %25 {strides = array<i32>} : memref<8x8xf32, #tpu.memory_space<vmem>>, vector<8x8xf32>,
    return
  }
  func.func @transform_0(%arg0: i32) -> (i32, i32) {
    %c0_i32 = arith.constant 0 : i32
    %c0_i32_0 = arith.constant 0 : i32
    return %arg0, %c0_i32 : i32, i32
  }
  func.func @transform_1(%arg0: i32) -> (i32, i32) {
    %c0_i32 = arith.constant 0 : i32
    %c0_i32_0 = arith.constant 0 : i32
    %c0_i32_1 = arith.constant 0 : i32
    return %c0_i32, %c0_i32_0 : i32, i32
  }
  func.func @transform_2(%arg0: i32) -> (i32, i32) {
    %c0_i32 = arith.constant 0 : i32
    %c0_i32_0 = arith.constant 0 : i32
    %c0_i32_1 = arith.constant 0 : i32
    return %c0_i32, %c0_i32_0 : i32, i32
  }
  func.func @transform_3(%arg0: i32) -> (i32, i32) {
    %c0_i32 = arith.constant 0 : i32
    %c0_i32_0 = arith.constant 0 : i32
    %c0_i32_1 = arith.constant 0 : i32
    return %c0_i32, %c0_i32_0 : i32, i32
  }
  func.func @transform_4(%arg0: i32) -> (i32, i32) {
    %c0_i32 = arith.constant 0 : i32
    %c0_i32_0 = arith.constant 0 : i32
    %c0_i32_1 = arith.constant 0 : i32
    return %c0_i32, %c0_i32_0 : i32, i32
  }
  func.func @transform_5(%arg0: i32) -> (i32, i32) {
    %c0_i32 = arith.constant 0 : i32
    %c0_i32_0 = arith.constant 0 : i32
    %c0_i32_1 = arith.constant 0 : i32
    return %c0_i32, %c0_i32_0 : i32, i32
  }
  func.func @transform_6(%arg0: i32) -> (i32, i32) {
    %c0_i32 = arith.constant 0 : i32
    %c0_i32_0 = arith.constant 0 : i32
    %c0_i32_1 = arith.constant 0 : i32
    return %c0_i32, %c0_i32_0 : i32, i32
  }
  func.func @transform_7(%arg0: i32) -> (i32, i32) {
    %c0_i32 = arith.constant 0 : i32
    %c0_i32_0 = arith.constant 0 : i32
    return %arg0, %c0_i32 : i32, i32
  }
}

</mosaic_0001>

<llo_original>
// kernel: dqn_forward.1
$region0: #{dqn_forward.1}
  #allocation0 [shape = 'u32[]', space=smem, size = 0x4, offset = 0x4, fixed_abs, tag = 'smem constant byte address 0x4 - core index']
  #allocation1 [shape = 'u32[144,128]{1,0:T(1,128)}', space=vmem, size = 0x12000, scoped, tag = 'internal scratch']
  %s0 = inlined_call_operand.vmem [shape: f32[8,32], index: 0, kind: input, shape index: {}]
  %s1 = inlined_call_operand.vmem [shape: bf16[32,128], index: 1, kind: input, shape index: {}]
  %s2 = inlined_call_operand.vmem [shape: f32[1,128], index: 2, kind: input, shape index: {}]
  %s3 = inlined_call_operand.vmem [shape: bf16[128,128], index: 3, kind: input, shape index: {}]
  %s4 = inlined_call_operand.vmem [shape: f32[1,128], index: 4, kind: input, shape index: {}]
  %s5 = inlined_call_operand.vmem [shape: bf16[128,128], index: 5, kind: input, shape index: {}]
  %s6 = inlined_call_operand.vmem [shape: f32[1,128], index: 6, kind: input, shape index: {}]
  %s7 = inlined_call_operand.vmem [shape: f32[8,8], index: 7, kind: output, shape index: {}]
  %s8 = sld [smem:[#allocation0]]
  $region38: #{dqn_forward.1} parent=0
    _
  %s10 = ssub.s32 1, %s8
  %s11 = scalar_select 0, %s10, %s8
  // Predicated region
  $region2: #{dqn_forward.1} parent=0 // pred_check
    _
  $region3: #{dqn_forward.1} parent=0 // pred_check_branch
    %13 = sbr.rel (0) target = $region5
  $region4: #{dqn_forward.1} parent=0 // pred_region
    _
  $region5: #{dqn_forward.1} parent=0 // pred_fallthru
    _
  // Predicated region
  $region6: #{dqn_forward.1} parent=0 // pred_check
    _
  $region7: #{dqn_forward.1} parent=0 // pred_check_branch
    %15 = sbr.rel (0) target = $region9
  $region8: #{dqn_forward.1} parent=0 // pred_region
    _
  $region9: #{dqn_forward.1} parent=0 // pred_fallthru
    _
  // Predicated region
  $region10: #{dqn_forward.1} parent=0 // pred_check
    _
  $region11: #{dqn_forward.1} parent=0 // pred_check_branch
    %17 = sbr.rel (0) target = $region13
  $region12: #{dqn_forward.1} parent=0 // pred_region
    _
  $region13: #{dqn_forward.1} parent=0 // pred_fallthru
    _
  // Predicated region
  $region14: #{dqn_forward.1} parent=0 // pred_check
    _
  $region15: #{dqn_forward.1} parent=0 // pred_check_branch
    %19 = sbr.rel (0) target = $region17
  $region16: #{dqn_forward.1} parent=0 // pred_region
    _
  $region17: #{dqn_forward.1} parent=0 // pred_fallthru
    _
  // Predicated region
  $region18: #{dqn_forward.1} parent=0 // pred_check
    _
  $region19: #{dqn_forward.1} parent=0 // pred_check_branch
    %21 = sbr.rel (0) target = $region21
  $region20: #{dqn_forward.1} parent=0 // pred_region
    _
  $region21: #{dqn_forward.1} parent=0 // pred_fallthru
    _
  // Predicated region
  $region22: #{dqn_forward.1} parent=0 // pred_check
    _
  $region23: #{dqn_forward.1} parent=0 // pred_check_branch
    %23 = sbr.rel (0) target = $region25
  $region24: #{dqn_forward.1} parent=0 // pred_region
    _
  $region25: #{dqn_forward.1} parent=0 // pred_fallthru
    _
  // Predicated region
  $region26: #{dqn_forward.1} parent=0 // pred_check
    _
  $region27: #{dqn_forward.1} parent=0 // pred_check_branch
    %25 = sbr.rel (0) target = $region29
  $region28: #{dqn_forward.1} parent=0 // pred_region
    _
  $region29: #{dqn_forward.1} parent=0 // pred_fallthru
    _
  %v27 = vld [vmem:[%s0] sm:$0xff]
  %v28 = vpack.c.bf16 %v27, %v27
  %v29 = vld [vmem:[%s1] sm:$0xf]
  %v30 = vld [vmem:[%s1 + $0x4] sm:$0xf]
  %v31 = vld [vmem:[%s1 + $0x8] sm:$0xf]
  %v32 = vld [vmem:[%s1 + $0xc] sm:$0xf]
  %v33 = vld [vmem:[%s2] sm:$0x1]
  %v35 = vlaneseq
  %v36 = vshrl.u32 %v35, 7
  %v37 = vsub.s32 0, %v36
  %v38 = vrot.slane %v33, %v37
  %v44 = vunpack.c.l.b16 %v29
  %v45 = vunpack.c.l.b16 %v30
  %v46 = vunpack.c.l.b16 %v31
  %v47 = vunpack.c.l.b16 %v32
  %v48 = vpack.c.b16 %v45, %v44
  %v49 = vpack.c.b16 %v47, %v46
  %vm52 = vcmask 261120
  %v54 = vsel %vm52, %v28, 0
  %56 = vmatprep.subr.bf16.mxu0 0
  %57 = vmatpush1.bf16.msra.mxu0 0
  %58 = vmatprep.subr.bf16.mxu0 0
  %59 = vmatpush1.bf16.msra.mxu0 0
  %60 = vmatprep.subr.bf16.mxu0 0
  %61 = vmatpush1.bf16.msra.mxu0 0
  %62 = vmatprep.subr.bf16.mxu0 0
  %63 = vmatpush1.bf16.msra.mxu0 0
  %64 = vmatprep.subr.bf16.mxu0 0
  %65 = vmatpush1.bf16.msra.mxu0 0
  %66 = vmatprep.subr.bf16.mxu0 0
  %67 = vmatpush1.bf16.msra.mxu0 0
  %68 = vmatprep.subr.bf16.mxu0 0
  %69 = vmatpush1.bf16.msra.mxu0 %v49
  %70 = vmatprep.subr.bf16.mxu0 0
  %71 = vmatpush1.bf16.msra.mxu0 %v48
  %72 = vmatprep.subr.bf16.mxu0 0
  %73 = vmatpush2.bf16.msra.mxu0 0
  %74 = vmatprep.subr.bf16.mxu0 0
  %75 = vmatpush2.bf16.msra.mxu0 0
  %76 = vmatprep.subr.bf16.mxu0 0
  %77 = vmatpush2.bf16.msra.mxu0 0
  %78 = vmatprep.subr.bf16.mxu0 0
  %79 = vmatpush2.bf16.msra.mxu0 0
  %80 = vmatprep.subr.bf16.mxu0 0
  %81 = vmatpush2.bf16.msra.mxu0 0
  %82 = vmatprep.subr.bf16.mxu0 0
  %83 = vmatpush2.bf16.msra.mxu0 0
  %84 = vmatprep.subr.bf16.mxu0 0
  %85 = vmatpush2.bf16.msra.mxu0 0
  %86 = vmatprep.subr.bf16.mxu0 0
  %87 = vmatpush2.bf16.msra.mxu0 0
  %88 = vmatprep.mubr.bf16.mxu0 0
  %89 = vmatmul.mubr.bf16.gmra.mxu0 %v54
  %v90 = vpop.f32.mrf.mxu0
  %v91 = vadd.f32 %v38, %v90
  %v92 = vpop.f32.mrf.mxu0
  %v93 = vpop.f32.mrf.mxu0
  %v94 = vpop.f32.mrf.mxu0
  %95 = vdwg.mxu0
  %v96 = vmax.f32 %v91, 0.0
  %v97 = vpack.c.bf16 %v96, %v96
  %v98 = vld [vmem:[%s3] sm:$0xf]
  %v99 = vld [vmem:[%s3 + $0x4] sm:$0xf]
  %v100 = vld [vmem:[%s3 + $0x8] sm:$0xf]
  %v101 = vld [vmem:[%s3 + $0xc] sm:$0xf]
  %v102 = vld [vmem:[%s3 + $0x10] sm:$0xf]
  %v103 = vld [vmem:[%s3 + $0x14] sm:$0xf]
  %v104 = vld [vmem:[%s3 + $0x18] sm:$0xf]
  %v105 = vld [vmem:[%s3 + $0x1c] sm:$0xf]
  %v106 = vld [vmem:[%s3 + $0x20] sm:$0xf]
  %v107 = vld [vmem:[%s3 + $0x24] sm:$0xf]
  %v108 = vld [vmem:[%s3 + $0x28] sm:$0xf]
  %v109 = vld [vmem:[%s3 + $0x2c] sm:$0xf]
  %v110 = vld [vmem:[%s3 + $0x30] sm:$0xf]
  %v111 = vld [vmem:[%s3 + $0x34] sm:$0xf]
  %v112 = vld [vmem:[%s3 + $0x38] sm:$0xf]
  %v113 = vld [vmem:[%s3 + $0x3c] sm:$0xf]
  %v114 = vld [vmem:[%s4] sm:$0x1]
  %v116 = vlaneseq
  %v117 = vshrl.u32 %v116, 7
  %v118 = vsub.s32 0, %v117
  %v119 = vrot.slane %v114, %v118
  %v137 = vunpack.c.l.b16 %v98
  %v138 = vunpack.c.l.b16 %v99
  %v139 = vunpack.c.l.b16 %v100
  %v140 = vunpack.c.l.b16 %v101
  %v141 = vunpack.c.l.b16 %v102
  %v142 = vunpack.c.l.b16 %v103
  %v143 = vunpack.c.l.b16 %v104
  %v144 = vunpack.c.l.b16 %v105
  %v145 = vunpack.c.l.b16 %v106
  %v146 = vunpack.c.l.b16 %v107
  %v147 = vunpack.c.l.b16 %v108
  %v148 = vunpack.c.l.b16 %v109
  %v149 = vunpack.c.l.b16 %v110
  %v150 = vunpack.c.l.b16 %v111
  %v151 = vunpack.c.l.b16 %v112
  %v152 = vunpack.c.l.b16 %v113
  %v153 = vpack.c.b16 %v138, %v137
  %v154 = vpack.c.b16 %v140, %v139
  %v155 = vpack.c.b16 %v142, %v141
  %v156 = vpack.c.b16 %v144, %v143
  %v157 = vpack.c.b16 %v146, %v145
  %v158 = vpack.c.b16 %v148, %v147
  %v159 = vpack.c.b16 %v150, %v149
  %v160 = vpack.c.b16 %v152, %v151
  %169 = vmatprep.subr.bf16.mxu0 0
  %170 = vmatpush1.bf16.msra.mxu0 %v160
  %171 = vmatprep.subr.bf16.mxu0 0
  %172 = vmatpush1.bf16.msra.mxu0 %v159
  %173 = vmatprep.subr.bf16.mxu0 0
  %174 = vmatpush1.bf16.msra.mxu0 %v158
  %175 = vmatprep.subr.bf16.mxu0 0
  %176 = vmatpush1.bf16.msra.mxu0 %v157
  %177 = vmatprep.subr.bf16.mxu0 0
  %178 = vmatpush1.bf16.msra.mxu0 %v156
  %179 = vmatprep.subr.bf16.mxu0 0
  %180 = vmatpush1.bf16.msra.mxu0 %v155
  %181 = vmatprep.subr.bf16.mxu0 0
  %182 = vmatpush1.bf16.msra.mxu0 %v154
  %183 = vmatprep.subr.bf16.mxu0 0
  %184 = vmatpush1.bf16.msra.mxu0 %v153
  %185 = vmatprep.subr.bf16.mxu0 0
  %186 = vmatpush2.bf16.msra.mxu0 0
  %187 = vmatprep.subr.bf16.mxu0 0
  %188 = vmatpush2.bf16.msra.mxu0 0
  %189 = vmatprep.subr.bf16.mxu0 0
  %190 = vmatpush2.bf16.msra.mxu0 0
  %191 = vmatprep.subr.bf16.mxu0 0
  %192 = vmatpush2.bf16.msra.mxu0 0
  %193 = vmatprep.subr.bf16.mxu0 0
  %194 = vmatpush2.bf16.msra.mxu0 0
  %195 = vmatprep.subr.bf16.mxu0 0
  %196 = vmatpush2.bf16.msra.mxu0 0
  %197 = vmatprep.subr.bf16.mxu0 0
  %198 = vmatpush2.bf16.msra.mxu0 0
  %199 = vmatprep.subr.bf16.mxu0 0
  %200 = vmatpush2.bf16.msra.mxu0 0
  %201 = vmatprep.mubr.bf16.mxu0 0
  %202 = vmatmul.mubr.bf16.gmra.mxu0 %v97
  %v203 = vpop.f32.mrf.mxu0
  %v204 = vadd.f32 %v119, %v203
  %v205 = vpop.f32.mrf.mxu0
  %v206 = vpop.f32.mrf.mxu0
  %v207 = vpop.f32.mrf.mxu0
  %208 = vdwg.mxu0
  %v209 = vmax.f32 %v204, 0.0
  %v210 = vpack.c.bf16 %v209, %v209
  %v211 = vld [vmem:[%s5] sm:$0xf]
  %v212 = vld [vmem:[%s5 + $0x4] sm:$0xf]
  %v213 = vld [vmem:[%s5 + $0x8] sm:$0xf]
  %v214 = vld [vmem:[%s5 + $0xc] sm:$0xf]
  %v215 = vld [vmem:[%s5 + $0x10] sm:$0xf]
  %v216 = vld [vmem:[%s5 + $0x14] sm:$0xf]
  %v217 = vld [vmem:[%s5 + $0x18] sm:$0xf]
  %v218 = vld [vmem:[%s5 + $0x1c] sm:$0xf]
  %v219 = vld [vmem:[%s5 + $0x20] sm:$0xf]
  %v220 = vld [vmem:[%s5 + $0x24] sm:$0xf]
  %v221 = vld [vmem:[%s5 + $0x28] sm:$0xf]
  %v222 = vld [vmem:[%s5 + $0x2c] sm:$0xf]
  %v223 = vld [vmem:[%s5 + $0x30] sm:$0xf]
  %v224 = vld [vmem:[%s5 + $0x34] sm:$0xf]
  %v225 = vld [vmem:[%s5 + $0x38] sm:$0xf]
  %v226 = vld [vmem:[%s5 + $0x3c] sm:$0xf]
  %v227 = vld [vmem:[%s6] sm:$0x1]
  %v229 = vlaneseq
  %v230 = vshrl.u32 %v229, 7
  %v231 = vsub.s32 0, %v230
  %v232 = vrot.slane %v227, %v231
  %v250 = vunpack.c.l.b16 %v211
  %v251 = vunpack.c.l.b16 %v212
  %v252 = vunpack.c.l.b16 %v213
  %v253 = vunpack.c.l.b16 %v214
  %v254 = vunpack.c.l.b16 %v215
  %v255 = vunpack.c.l.b16 %v216
  %v256 = vunpack.c.l.b16 %v217
  %v257 = vunpack.c.l.b16 %v218
  %v258 = vunpack.c.l.b16 %v219
  %v259 = vunpack.c.l.b16 %v220
  %v260 = vunpack.c.l.b16 %v221
  %v261 = vunpack.c.l.b16 %v222
  %v262 = vunpack.c.l.b16 %v223
  %v263 = vunpack.c.l.b16 %v224
  %v264 = vunpack.c.l.b16 %v225
  %v265 = vunpack.c.l.b16 %v226
  %v266 = vpack.c.b16 %v251, %v250
  %v267 = vpack.c.b16 %v253, %v252
  %v268 = vpack.c.b16 %v255, %v254
  %v269 = vpack.c.b16 %v257, %v256
  %v270 = vpack.c.b16 %v259, %v258
  %v271 = vpack.c.b16 %v261, %v260
  %v272 = vpack.c.b16 %v263, %v262
  %v273 = vpack.c.b16 %v265, %v264
  %282 = vmatprep.subr.bf16.mxu0 0
  %283 = vmatpush1.bf16.msra.mxu0 %v273
  %284 = vmatprep.subr.bf16.mxu0 0
  %285 = vmatpush1.bf16.msra.mxu0 %v272
  %286 = vmatprep.subr.bf16.mxu0 0
  %287 = vmatpush1.bf16.msra.mxu0 %v271
  %288 = vmatprep.subr.bf16.mxu0 0
  %289 = vmatpush1.bf16.msra.mxu0 %v270
  %290 = vmatprep.subr.bf16.mxu0 0
  %291 = vmatpush1.bf16.msra.mxu0 %v269
  %292 = vmatprep.subr.bf16.mxu0 0
  %293 = vmatpush1.bf16.msra.mxu0 %v268
  %294 = vmatprep.subr.bf16.mxu0 0
  %295 = vmatpush1.bf16.msra.mxu0 %v267
  %296 = vmatprep.subr.bf16.mxu0 0
  %297 = vmatpush1.bf16.msra.mxu0 %v266
  %298 = vmatprep.subr.bf16.mxu0 0
  %299 = vmatpush2.bf16.msra.mxu0 0
  %300 = vmatprep.subr.bf16.mxu0 0
  %301 = vmatpush2.bf16.msra.mxu0 0
  %302 = vmatprep.subr.bf16.mxu0 0
  %303 = vmatpush2.bf16.msra.mxu0 0
  %304 = vmatprep.subr.bf16.mxu0 0
  %305 = vmatpush2.bf16.msra.mxu0 0
  %306 = vmatprep.subr.bf16.mxu0 0
  %307 = vmatpush2.bf16.msra.mxu0 0
  %308 = vmatprep.subr.bf16.mxu0 0
  %309 = vmatpush2.bf16.msra.mxu0 0
  %310 = vmatprep.subr.bf16.mxu0 0
  %311 = vmatpush2.bf16.msra.mxu0 0
  %312 = vmatprep.subr.bf16.mxu0 0
  %313 = vmatpush2.bf16.msra.mxu0 0
  %314 = vmatprep.mubr.bf16.mxu0 0
  %315 = vmatmul.mubr.bf16.gmra.mxu0 %v210
  %v316 = vpop.f32.mrf.mxu0
  %v317 = vadd.f32 %v232, %v316
  %v318 = vpop.f32.mrf.mxu0
  %v319 = vpop.f32.mrf.mxu0
  %v320 = vpop.f32.mrf.mxu0
  %321 = vdwg.mxu0
  %v322 = vmax.f32 %v317, 0.0
  %vm323 = vcmask 64512
  %324 = vst.msk [vmem:[%s7] sm:$0xff] %vm323, %v322
  // Predicated region
  $region30: #{dqn_forward.1} parent=0 // pred_check
    _
  $region31: #{dqn_forward.1} parent=0 // pred_check_branch
    %326 = sbr.rel (0) target = $region33
  $region32: #{dqn_forward.1} parent=0 // pred_region
    _
  $region33: #{dqn_forward.1} parent=0 // pred_fallthru
    _
  // Predicated region
  $region34: #{dqn_forward.1} parent=0 // pred_check
    _
  $region35: #{dqn_forward.1} parent=0 // pred_check_branch
    %328 = sbr.rel (0) target = $region37
  $region36: #{dqn_forward.1} parent=0 // pred_region
    _
  $region37: #{dqn_forward.1} parent=0 // pred_fallthru
    _

</llo_original>
